<compile_context>
chip_gen: v7x
topology: tpu7x:2x2x1
jax: 0.10.0
libtpu: 0.0.40
codegen_flags: <defaults>
</compile_context>

<pallas_src>
import functools

import jax
import jax.numpy as jnp
from jax.experimental import pallas as pl
from jax.experimental.pallas import tpu as pltpu

_TARGET_BLOCK_ELEMS = 1 << 20          # ~4 MiB of f32 per two-pass block
_FALLBACK_VMEM_CAP = 64 * 1024 * 1024  # conservative (v7x per-TC) if query fails


def _vmem_capacity_bytes():
    try:
        return int(pltpu.get_tpu_info().vmem_capacity_bytes)
    except Exception:
        return _FALLBACK_VMEM_CAP


def _pick_cols(n):
    """Largest lane-dense width in {512,256,128} dividing n, else (512, pad)."""
    for c in (512, 256, 128):
        if n % c == 0:
            return c, False
    return 512, True


# ---------------------------------------------------------------------------
# Fused single-pass kernel (whole tensor resident in VMEM, no grid).
# ---------------------------------------------------------------------------
def _fused_kernel(x_ref, o_ref, *, n, max_val, min_val, scale_den, need_mask):
    rows, cols = x_ref.shape
    x = x_ref[...].astype(jnp.float32)
    n_f = jnp.float32(n)

    # Zero padding (if any) contributes nothing to the raw sum -> mean needs no mask.
    mean = jnp.sum(x) / n_f
    centered = x - mean
    if need_mask:
        # Padded tail elements become (0 - mean) after centering; mask them out.
        flat_idx = (jax.lax.broadcasted_iota(jnp.int32, (rows, cols), 0) * cols
                    + jax.lax.broadcasted_iota(jnp.int32, (rows, cols), 1))
        centered = jnp.where(flat_idx < n, centered, 0.0)

    var = jnp.sum(centered * centered) / (n_f - 1.0)   # unbiased, like torch.std()
    std = jnp.sqrt(jnp.maximum(var, 0.0))

    scale = 3.0 * std / scale_den
    # Guard degenerate constant input (scale == 0): reference produces NaN;
    # here every element collapses to the zero_point instead.
    safe_scale = jnp.where(scale > 0.0, scale, 1.0)
    inv_scale = 1.0 / safe_scale

    q = jnp.round(jnp.clip((x - mean) * inv_scale, min_val, max_val))
    o_ref[...] = (q * scale + mean).astype(o_ref.dtype)


def _fold_lanes(v, cols):
    """(8, cols) -> (8, 128) by summing lane-tile-aligned 128-wide slices (VALU)."""
    acc = v[:, 0:128]
    for g in range(1, cols // 128):
        acc = acc + v[:, g * 128:(g + 1) * 128]
    return acc


# ---------------------------------------------------------------------------
# Two-pass fallback: pass 1 — per-block vector partial reductions.
# ---------------------------------------------------------------------------
def _reduce_kernel(x_ref, sum_ref, sq_ref, *, block_rows, cols, total_rows, need_mask):
    x = x_ref[...].astype(jnp.float32)
    if need_mask:
        # Non-divisible grid: rows past the end of the array hold garbage; zero them.
        row = jax.lax.broadcasted_iota(jnp.int32, (block_rows, cols), 0)
        valid = (pl.program_id(0) * block_rows + row) < total_rows
        x = jnp.where(valid, x, 0.0)

    # (block_rows, cols) -> (block_rows//8, 8, cols): sublane-tile-aligned view;
    # the axis-0 reduction is plain VALU adds hidden under the HBM DMA.
    x3 = x.reshape(block_rows // 8, 8, cols)
    s = jnp.sum(x3, axis=0)            # (8, cols)
    sq = jnp.sum(x3 * x3, axis=0)      # (8, cols)

    # Fold lane groups so each block writes back only a single (8, 128) tile.
    sum_ref[...] = _fold_lanes(s, cols)[None]
    sq_ref[...] = _fold_lanes(sq, cols)[None]


# ---------------------------------------------------------------------------
# Two-pass fallback: pass 2 — element-wise fake quantization.
# ---------------------------------------------------------------------------
def _quant_kernel(params_ref, x_ref, o_ref, *, max_val, min_val):
    scale = params_ref[0]
    inv_scale = params_ref[1]
    zp = params_ref[2]
    x = x_ref[...].astype(jnp.float32)
    q = jnp.round(jnp.clip((x - zp) * inv_scale, min_val, max_val))
    o_ref[...] = (q * scale + zp).astype(o_ref.dtype)


def post_fixed_q(x, bitwidth=4, asymmetric=True, *, block_rows=None, fused_max_elems=None):
    """JAX/Pallas implementation of postFixedQ.forward (inference path)."""
    if not asymmetric:
        # TODO(synk): symmetric branch (min/max based scale) not implemented;
        # postFixedQ hard-codes the asymmetric path.
        raise NotImplementedError("only the asymmetric path of postFixedQ is implemented")

    orig_shape = x.shape
    n = x.size
    max_val = 2 ** (bitwidth - 1) - 1
    min_val = -(2 ** (bitwidth - 1)) + 1
    clip_rate = 1.0
    scale_den = float(max_val * clip_rate)   # clamp always uses plain max_val/min_val

    vmem_cap = _vmem_capacity_bytes()
    if fused_max_elems is None:
        # One HBM read + one write, whole slab + f32 temporaries in VMEM.
        # ~4M f32 on v5e/v6e (128 MiB VMEM), ~2M f32 on v7x (64 MiB).
        fused_max_elems = (vmem_cap // 8) // 4
    fused_vmem_limit = min(3 * vmem_cap // 4, 96 * 1024 * 1024)
    twopass_vmem_limit = min(3 * vmem_cap // 4, 64 * 1024 * 1024)

    cols, needs_pad = _pick_cols(n)
    flat = x.reshape(-1)
    if needs_pad:
        # Truly ragged sizes (n % 128 != 0): pad once to a lane multiple (full copy).
        rows = (n + cols - 1) // cols
        flat = jnp.pad(flat, (0, rows * cols - n))   # zeros: harmless to sum / sum_sq
    else:
        rows = n // cols                              # pure reshape -> no HBM copy

    x2d = flat.reshape(rows, cols)

    # ---------------- fused single-pass path (tensor fits in VMEM) ----------------
    if n <= fused_max_elems:
        out2d = pl.pallas_call(
            functools.partial(_fused_kernel, n=n, max_val=float(max_val),
                              min_val=float(min_val), scale_den=scale_den,
                              need_mask=needs_pad),
            out_shape=jax.ShapeDtypeStruct((rows, cols), x.dtype),
            # No grid -> single invocation, whole arrays, single-buffered VMEM.
            in_specs=[pl.BlockSpec(memory_space=pltpu.MemorySpace.VMEM)],
            out_specs=pl.BlockSpec(memory_space=pltpu.MemorySpace.VMEM),
            compiler_params=pltpu.CompilerParams(vmem_limit_bytes=fused_vmem_limit),
        )(x2d)
    else:
        # ---------------- two-pass path (large tensors) ----------------
        if block_rows is None:
            block_rows = max(8, (_TARGET_BLOCK_ELEMS // cols) // 8 * 8)  # ~4 MiB blocks
        assert block_rows % 8 == 0
        num_blocks = (rows + block_rows - 1) // block_rows
        need_row_mask = (rows % block_rows) != 0

        # Pass 1: per-block (8, 128) vector partials; "parallel" lets v7x split
        # the reduce across both TensorCores.
        psum, psq = pl.pallas_call(
            functools.partial(_reduce_kernel, block_rows=block_rows, cols=cols,
                              total_rows=rows, need_mask=need_row_mask),
            out_shape=(
                jax.ShapeDtypeStruct((num_blocks, 8, 128), jnp.float32),
                jax.ShapeDtypeStruct((num_blocks, 8, 128), jnp.float32),
            ),
            grid=(num_blocks,),
            in_specs=[pl.BlockSpec((block_rows, cols), lambda i: (i, 0))],
            out_specs=(
                pl.BlockSpec((1, 8, 128), lambda i: (i, 0, 0)),
                pl.BlockSpec((1, 8, 128), lambda i: (i, 0, 0)),
            ),
            compiler_params=pltpu.CompilerParams(
                dimension_semantics=("parallel",),
                vmem_limit_bytes=twopass_vmem_limit),
        )(x2d)

        # Tiny XLA reduction over the (num_blocks, 8, 128) partials.
        n_f = jnp.float32(n)
        total = jnp.sum(psum)
        total_sq = jnp.sum(psq)
        mean = total / n_f
        # TODO(synk): sum/sum-of-squares variance can cancel catastrophically for huge
        # tensors with tiny relative variance; Chan's per-block-centered combine would fix it.
        var = jnp.maximum((total_sq - n_f * mean * mean) / (n_f - 1.0), 0.0)
        std = jnp.sqrt(var)

        scale = 3.0 * std / scale_den
        safe_scale = jnp.where(scale > 0.0, scale, 1.0)   # constant-input guard
        inv_scale = 1.0 / safe_scale
        params = jnp.stack([scale, inv_scale, mean]).astype(jnp.float32)

        # Pass 2: element-wise fake quantization; reciprocal multiply, native dtype out.
        # The partial last grid block only reads OOB garbage whose writes are dropped.
        out2d = pl.pallas_call(
            functools.partial(_quant_kernel,
                              max_val=float(max_val), min_val=float(min_val)),
            out_shape=jax.ShapeDtypeStruct((rows, cols), x.dtype),
            grid=(num_blocks,),
            in_specs=[
                pl.BlockSpec(memory_space=pltpu.MemorySpace.SMEM),   # [scale, 1/scale, zp]
                pl.BlockSpec((block_rows, cols), lambda i: (i, 0)),
            ],
            out_specs=pl.BlockSpec((block_rows, cols), lambda i: (i, 0)),
            compiler_params=pltpu.CompilerParams(
                dimension_semantics=("parallel",),
                vmem_limit_bytes=twopass_vmem_limit),
        )(params, x2d)

    out_flat = out2d.reshape(-1)
    if needs_pad:
        out_flat = out_flat[:n]
    return out_flat.reshape(orig_shape)


def _reference(x, bitwidth=4):
    max_val = 2 ** (bitwidth - 1) - 1
    min_val = -(2 ** (bitwidth - 1)) + 1
    xf = x.astype(jnp.float32)
    zp = jnp.mean(xf)
    scale = 3.0 * jnp.std(xf, ddof=1) / max_val
    q = jnp.round(jnp.clip((xf - zp) / scale, min_val, max_val))
    return (q * scale + zp).astype(x.dtype)


def _check(name, x, y):
    y_ref = _reference(x)
    assert y.shape == x.shape and y.dtype == x.dtype, name
    # One quantization step: different f32 reduction orders for mean/std can flip
    # rare round-boundary elements by at most one step.
    step = float(3.0 * jnp.std(x.astype(jnp.float32), ddof=1) / 7.0)
    d = jnp.abs(y.astype(jnp.float32) - y_ref.astype(jnp.float32))
    assert float(jnp.max(d)) <= step * 1.001 + 1e-6, f"{name}: max diff too large"
    assert float(jnp.mean((d > 1e-4).astype(jnp.float32))) < 0.01, f"{name}: too many mismatches"


if __name__ == "__main__":
    # NCHW activation tensor, as a post-layer quantizer would see it
    # (fused path, lane-aligned: zero-copy, no in-kernel mask).
    x = jax.random.normal(jax.random.PRNGKey(0), (2, 4, 16, 16), dtype=jnp.float32)
    y = post_fixed_q(x, bitwidth=4, asymmetric=True)
    jax.block_until_ready(y)
    _check("fused/aligned", x, y)

    # Fused path with a ragged element count (wrapper pad + in-kernel mask).
    x_r = jax.random.normal(jax.random.PRNGKey(1), (2, 3, 5, 7), dtype=jnp.float32)
    y_r = post_fixed_q(x_r)
    jax.block_until_ready(y_r)
    _check("fused/ragged", x_r, y_r)

    # Two-pass path, lane-aligned, rows NOT a multiple of block_rows:
    # exercises the new no-pad/no-slice path with in-kernel partial-block masking.
    x2 = jax.random.normal(jax.random.PRNGKey(2), (2, 5, 32, 32), dtype=jnp.float32)
    y2 = post_fixed_q(x2, block_rows=8, fused_max_elems=0)
    jax.block_until_ready(y2)
    _check("two-pass/aligned", x2, y2)

    # Two-pass path, ragged element count (wrapper pad + slice fallback).
    x3 = jax.random.normal(jax.random.PRNGKey(3), (3, 7, 20, 24), dtype=jnp.float32)
    y3 = post_fixed_q(x3, block_rows=8, fused_max_elems=0)
    jax.block_until_ready(y3)
    _check("two-pass/ragged", x3, y3)

    print("KERNEL_OK")
</pallas_src>

<mosaic_0001>
module attributes {stable_mosaic.version = 11 : i64} {
  func.func @_fused_kernel(%arg0: memref<4x512xf32, #tpu.memory_space<vmem>>, %arg1: memref<4x512xf32, #tpu.memory_space<vmem>>) attributes {dimension_semantics = [], scalar_prefetch = 0 : i64, scratch_operands = 0 : i64, tpu.core_type = #tpu.core_type<tc>} {
    %c0 = arith.constant 0 : index
    %c0_0 = arith.constant 0 : index
    %0 = vector.load %arg0[%c0, %c0_0] : memref<4x512xf32, #tpu.memory_space<vmem>>, vector<4x512xf32>
    %1 = vector.shape_cast %0 : vector<4x512xf32> to vector<1x4x512xf32>
    %cst = arith.constant dense<0.000000e+00> : vector<1xf32>
    %2 = vector.multi_reduction <add>, %1, %cst [1, 2] : vector<1x4x512xf32> to vector<1xf32>
    %3 = vector.shape_cast %2 : vector<1xf32> to vector<1x1x1xf32>
    %4 = vector.extract %3[0, 0, 0] : f32 from vector<1x1x1xf32>
    %cst_1 = arith.constant 2.048000e+03 : f32
    %5 = arith.divf %4, %cst_1 : f32
    %6 = vector.broadcast %5 : f32 to vector<4x512xf32>
    %7 = arith.subf %0, %6 : vector<4x512xf32>
    %8 = arith.mulf %7, %7 : vector<4x512xf32>
    %9 = vector.shape_cast %8 : vector<4x512xf32> to vector<1x4x512xf32>
    %cst_2 = arith.constant dense<0.000000e+00> : vector<1xf32>
    %10 = vector.multi_reduction <add>, %9, %cst_2 [1, 2] : vector<1x4x512xf32> to vector<1xf32>
    %11 = vector.shape_cast %10 : vector<1xf32> to vector<1x1x1xf32>
    %12 = vector.extract %11[0, 0, 0] : f32 from vector<1x1x1xf32>
    %cst_3 = arith.constant 2.048000e+03 : f32
    %cst_4 = arith.constant 1.000000e+00 : f32
    %13 = arith.subf %cst_3, %cst_4 : f32
    %14 = arith.divf %12, %13 : f32
    %cst_5 = arith.constant 0.000000e+00 : f32
    %15 = arith.maximumf %14, %cst_5 : f32
    %16 = math.sqrt %15 : f32
    %cst_6 = arith.constant 3.000000e+00 : f32
    %17 = arith.mulf %cst_6, %16 : f32
    %cst_7 = arith.constant 7.000000e+00 : f32
    %18 = arith.divf %17, %cst_7 : f32
    %cst_8 = arith.constant 0.000000e+00 : f32
    %19 = arith.cmpf ogt, %18, %cst_8 : f32
    %cst_9 = arith.constant 1.000000e+00 : f32
    %20 = arith.select %19, %18, %cst_9 : f32
    %cst_10 = arith.constant 1.000000e+00 : f32
    %21 = arith.divf %cst_10, %20 : f32
    %22 = vector.broadcast %5 : f32 to vector<4x512xf32>
    %23 = arith.subf %0, %22 : vector<4x512xf32>
    %24 = vector.broadcast %21 : f32 to vector<4x512xf32>
    %25 = arith.mulf %23, %24 : vector<4x512xf32>
    %cst_11 = arith.constant -7.000000e+00 : f32
    %cst_12 = arith.constant 7.000000e+00 : f32
    %26 = vector.broadcast %cst_11 : f32 to vector<4x512xf32>
    %27 = arith.maximumf %26, %25 : vector<4x512xf32>
    %28 = vector.broadcast %cst_12 : f32 to vector<4x512xf32>
    %29 = arith.minimumf %28, %27 : vector<4x512xf32>
    %30 = math.roundeven %29 : vector<4x512xf32>
    %31 = vector.broadcast %18 : f32 to vector<4x512xf32>
    %32 = arith.mulf %30, %31 : vector<4x512xf32>
    %33 = vector.broadcast %5 : f32 to vector<4x512xf32>
    %34 = arith.addf %32, %33 : vector<4x512xf32>
    %c0_13 = arith.constant 0 : index
    %c0_14 = arith.constant 0 : index
    %35 = vector.load %arg1[%c0_13, %c0_14] : memref<4x512xf32, #tpu.memory_space<vmem>>, vector<4x512xf32>
    tpu.vector_store %arg1[%c0_13, %c0_14], %34 {strides = array<i32>} : memref<4x512xf32, #tpu.memory_space<vmem>>, vector<4x512xf32>,
    return
  }
}

</mosaic_0001>

<llo_original>
// kernel: tpu_custom_call.1
$region0: #{tpu_custom_call.1}
  #allocation0 [shape = 'u32[]', space=smem, size = 0x4, offset = 0x4, fixed_abs, tag = 'smem constant byte address 0x4 - core index']
  #allocation1 [shape = 'u32[144,128]{1,0:T(1,128)}', space=vmem, size = 0x12000, scoped, tag = 'internal scratch']
  %s0 = inlined_call_operand.hbm [shape: f32[4,512], index: 0, kind: input, shape index: {}]
  %s1 = inlined_call_operand.hbm [shape: f32[4,512], index: 1, kind: output, shape index: {}]
  %s2 = sld [smem:[#allocation0]]
  $region18: #{tpu_custom_call.1} parent=0
    _
  %s4 = ssub.s32 1, %s2
  %s5 = scalar_select 0, %s4, %s2
  $region1: #{tpu_custom_call.1} parent=0
    #allocation2 [shape = 'u8[8192]{0}', space=vmem, size = 0x2000, scoped, tag = 'input window, operand 0, single buffered']
    #allocation3 [shape = 's32[1]{0}', space=sflag, size = 0x4, scoped, tag = 'scoped memory for tpu_custom_call.1']
    #allocation4 [shape = 's32[1]{0}', space=sflag, size = 0x4, scoped, tag = 'scoped memory for tpu_custom_call.1']
    #allocation5 [shape = 'u8[8192]{0}', space=vmem, size = 0x2000, scoped, tag = 'output window, operand 0, single buffered']
    %6 = vsyncpa [#allocation3], 0
    %7 = vsyncpa [#allocation4], 0
    // Predicated region
    $region2: #{tpu_custom_call.1} parent=1 // pred_check
      _
    $region3: #{tpu_custom_call.1} parent=1 // pred_check_branch
      %9 = sbr.rel (0) target = $region5
    $region4: #{tpu_custom_call.1} parent=1 // pred_region
      %s11 = ssub.s32 256, 256
      %12 = vsyncadd [#allocation3], %s11
      %s14 = sshll.u32 [#allocation2], 4
      %s15 = int_to_ptr.vmem [resolvable:$true] %s14
      %17 = dma.hbm_to_vmem [thread:$0]  %s0, 256, %s15, [#allocation3]
    $region5: #{tpu_custom_call.1} parent=1 // pred_fallthru
      _
    // Predicated region
    $region6: #{tpu_custom_call.1} parent=1 // pred_check
      _
    $region7: #{tpu_custom_call.1} parent=1 // pred_check_branch
      %19 = sbr.rel (0) target = $region9
    $region8: #{tpu_custom_call.1} parent=1 // pred_region
      %20 = dma.done [#allocation3], 256
    $region9: #{tpu_custom_call.1} parent=1 // pred_fallthru
      _
    %v21 = vld [vmem:[#allocation2] sm:$0xff]
    %v22 = vld [vmem:[#allocation2 + $0x8] sm:$0xff]
    %v25 = vcombine.high %v21, %v21
    %v26 = vcombine.high %v22, %v22
    %vm29 = vcmask 1043456
    %v30 = vsel %vm29, %v21, 0.0
    %v31 = vsel %vm29, %v25, 0.0
    %v32 = vadd.f32 %v30, %v31
    %v33 = vsel %vm29, %v22, 0.0
    %v34 = vadd.f32 %v32, %v33
    %v35 = vsel %vm29, %v26, 0.0
    %v36 = vadd.f32 %v34, %v35
    %37 = vadd.xlane.f32.xlu0 %v36
    %v38 = vpop.xlane.xlu0 %37
    %v39 = vrot.slane %v38, 4
    %v40 = vadd.f32 %v38, %v39
    %v41 = vrot.slane %v40, 2
    %v42 = vadd.f32 %v40, %v41
    %v43 = vrot.slane %v42, 1
    %v44 = vadd.f32 %v42, %v43
    %s45 = vtos %v44
    %v46 = vrcp.pop 2048.0
    %s47 = vtos %v46
    %s48 = smul.f32 %s45, %s47
    %v49 = vstv %s48
    %v50 = vsub.f32 %v21, %v49
    %v51 = vsub.f32 %v22, %v49
    %v52 = vmul.f32 %v50, %v50
    %v53 = vmul.f32 %v51, %v51
    %v56 = vcombine.high %v52, %v52
    %v57 = vcombine.high %v53, %v53
    %v60 = vsel %vm29, %v52, 0.0
    %v61 = vsel %vm29, %v56, 0.0
    %v62 = vadd.f32 %v60, %v61
    %v63 = vsel %vm29, %v53, 0.0
    %v64 = vadd.f32 %v62, %v63
    %v65 = vsel %vm29, %v57, 0.0
    %v66 = vadd.f32 %v64, %v65
    %67 = vadd.xlane.f32.xlu0 %v66
    %v68 = vpop.xlane.xlu0 %67
    %v69 = vrot.slane %v68, 4
    %v70 = vadd.f32 %v68, %v69
    %v71 = vrot.slane %v70, 2
    %v72 = vadd.f32 %v70, %v71
    %v73 = vrot.slane %v72, 1
    %v74 = vadd.f32 %v72, %v73
    %s75 = vtos %v74
    %v76 = vrcp.pop 2047.0
    %s77 = vtos %v76
    %s78 = smul.f32 %s75, %s77
    %s79 = smax.f32 %s78, 0.0
    %v80 = vstv %s79
    %v81 = vrsqrt.pop %v80
    %v82 = vmul.f32 %v80, %v81
    %vm83 = vcmp.eq.f32.partialorder %v80, inf
    %v84 = vsel %vm83, %v80, %v82
    %vm85 = vcmp.eq.f32.partialorder %v80, 0.0
    %v86 = vand.u32 %v80, 2147483648
    %v87 = vsel %vm85, %v86, %v84
    %s88 = vtos %v87
    %s89 = smul.f32 %s88, 3.0
    %v90 = vrcp.pop 7.0
    %s91 = vtos %v90
    %s92 = smul.f32 %s89, %s91
    %p93 = scmp.gt.f32.partialorder %s92, 0.0
    %s94 = scalar_select %p93, %s92, 1.0
    %v95 = vstv %s94
    %v96 = vrcp.pop %v95
    %s97 = vtos %v96
    %v98 = vstv %s97
    %v99 = vmul.f32 %v50, %v98
    %v100 = vmul.f32 %v51, %v98
    %v101 = vmax.f32 %v99, -7.0
    %v102 = vmax.f32 %v100, -7.0
    %v103 = vmin.f32 %v101, 7.0
    %v104 = vmin.f32 %v102, 7.0
    %v105 = vround.ne.pseudo %v103
    %v106 = vround.ne.pseudo %v104
    %v107 = vstv %s92
    %v108 = vmul.f32 %v105, %v107
    %v109 = vmul.f32 %v106, %v107
    %v110 = vadd.f32 %v108, %v49
    %v111 = vadd.f32 %v109, %v49
    %112 = vst [vmem:[#allocation5] sm:$0xff] %v110
    %113 = vst [vmem:[#allocation5 + $0x8] sm:$0xff] %v111
    // Predicated region
    $region10: #{tpu_custom_call.1} parent=1 // pred_check
      _
    $region11: #{tpu_custom_call.1} parent=1 // pred_check_branch
      %115 = sbr.rel (0) target = $region13
    $region12: #{tpu_custom_call.1} parent=1 // pred_region
      %s117 = ssub.s32 256, 256
      %118 = vsyncadd [#allocation4], %s117
      %s120 = sshll.u32 [#allocation5], 4
      %s121 = int_to_ptr.vmem [resolvable:$true] %s120
      %123 = dma.vmem_to_hbm [thread:$0]  %s121, 256, %s1, [#allocation4]
    $region13: #{tpu_custom_call.1} parent=1 // pred_fallthru
      _
    // Predicated region
    $region14: #{tpu_custom_call.1} parent=1 // pred_check
      _
    $region15: #{tpu_custom_call.1} parent=1 // pred_check_branch
      %125 = sbr.rel (0) target = $region17
    $region16: #{tpu_custom_call.1} parent=1 // pred_region
      %126 = dma.done [#allocation4], 256
    $region17: #{tpu_custom_call.1} parent=1 // pred_fallthru
      _
    %127 = vsyncpa [#allocation3], 1
    %128 = vsyncpa [#allocation4], 1

</llo_original>
